<compile_context>
chip_gen: v6e
topology: v6e:2x2x1
jax: 0.10.0
libtpu: 0.0.40
codegen_flags: <defaults>
</compile_context>

<pallas_src>
import jax
import jax.numpy as jnp
from jax.experimental import pallas as pl
from jax.experimental.pallas import tpu as pltpu


# ---------------------------------------------------------------------------
# Kernel: fused multi-critic VFNet forward
# ---------------------------------------------------------------------------
def _ensemble_kernel(x_ref, w1_ref, b1_ref, w2_ref, b2_ref, w3_ref, b3_ref,
                     o_ref):
    """Fused forward for all critics.

    x:  (TB, D)        f32
    w1: (D, C*H)       bf16   (layer-1 weights of all critics, fused)
    b1: (1, C*H)       f32
    w2: (C, H, H)      bf16
    b2: (C, H)         f32
    w3: (C, H)         f32    (scalar head weights)
    b3: (1, C)         f32
    o:  (TB, C)        f32    o[:, c] = critic_c(x)
    """
    num_critics, hidden = w3_ref.shape

    x = x_ref[...]                                   # (TB, D) f32
    x_lp = x.astype(w1_ref.dtype)                    # bf16 for the MXU

    # ---- layer 1: ONE wide matmul across all critics (N = C*H) ----------
    h1_all = jnp.tanh(
        jnp.dot(x_lp, w1_ref[...], preferred_element_type=jnp.float32)
        + b1_ref[...]
    )                                                # (TB, C*H) f32

    # ---- per-critic layer 2 + scalar head --------------------------------
    # Static unroll: C is small.
    # TODO(synk): switch to lax.fori_loop with per-iteration column stores
    # for large critic counts to bound vreg live ranges.
    vals = []
    for c in range(num_critics):
        h1_c = h1_all[:, c * hidden:(c + 1) * hidden]          # (TB, H) f32
        h2_c = jnp.tanh(
            jnp.dot(h1_c.astype(w2_ref.dtype), w2_ref[c],
                    preferred_element_type=jnp.float32)
            + b2_ref[c:c + 1, :]
        )                                                       # (TB, H) f32
        # Scalar head on the VPU/XLU (reduction), not an N=1 MXU matmul.
        vals.append(jnp.sum(h2_c * w3_ref[c:c + 1, :], axis=-1,
                            keepdims=True))                     # (TB, 1) f32

    out = jnp.concatenate(vals, axis=-1) + b3_ref[...]          # (TB, C)
    o_ref[...] = out.astype(o_ref.dtype)


# ---------------------------------------------------------------------------
# Jitted wrapper: one pallas_call for the whole ensemble
# ---------------------------------------------------------------------------
@jax.jit
def _ensemble_forward(x, stacked_params):
    """Returns a tuple of (B, 1) values, one per critic, from one kernel."""
    w1, b1, w2, b2, w3, b3 = stacked_params
    batch, obs_dim = x.shape
    num_critics, _ = w3.shape

    # --- robust batch tiling: cdiv grid with a zero-padded tail -----------
    if batch <= 256:
        tb = max(8, ((batch + 7) // 8) * 8)      # single tile, sublane aligned
    elif batch <= 2048:
        tb = 256                                 # >=2 grid steps from B>=512 (v7x)
    else:
        tb = 512                                 # bigger tiles for HBM efficiency
    padded = pl.cdiv(batch, tb) * tb
    if padded != batch:
        x = jnp.pad(x, ((0, padded - batch), (0, 0)))
    grid = (padded // tb,)

    def _resident(a):
        """Full-array block, constant index map -> stays VMEM-resident."""
        ndim = a.ndim
        return pl.BlockSpec(a.shape, lambda i, _n=ndim: (0,) * _n)

    out = pl.pallas_call(
        _ensemble_kernel,
        out_shape=jax.ShapeDtypeStruct((padded, num_critics), jnp.float32),
        grid=grid,
        in_specs=[pl.BlockSpec((tb, obs_dim), lambda i: (i, 0)),
                  _resident(w1), _resident(b1),
                  _resident(w2), _resident(b2),
                  _resident(w3), _resident(b3)],
        out_specs=pl.BlockSpec((tb, num_critics), lambda i: (i, 0)),
        compiler_params=pltpu.CompilerParams(
            dimension_semantics=("parallel",),
            vmem_limit_bytes=64 * 1024 * 1024),
    )(x, w1, b1, w2, b2, w3, b3)

    out = out[:batch]
    # Preserve the module's list-of-(B, 1) semantics via cheap slices.
    return tuple(out[:, c:c + 1] for c in range(num_critics))


# ---------------------------------------------------------------------------
# Parameter helpers
# ---------------------------------------------------------------------------
def init_vfnet_params(key, obs_dim, hidden_dim):
    """Deterministic fan-in-scaled init for one VFNet (obs_dim -> H -> H -> 1)."""
    k1, k2, k3 = jax.random.split(key, 3)
    w1 = jax.random.normal(k1, (obs_dim, hidden_dim), jnp.float32) / jnp.sqrt(obs_dim)
    b1 = jnp.zeros((1, hidden_dim), jnp.float32)
    w2 = jax.random.normal(k2, (hidden_dim, hidden_dim), jnp.float32) / jnp.sqrt(hidden_dim)
    b2 = jnp.zeros((1, hidden_dim), jnp.float32)
    w3 = jax.random.normal(k3, (hidden_dim, 1), jnp.float32) / jnp.sqrt(hidden_dim)
    b3 = jnp.zeros((1, 1), jnp.float32)
    return (w1, b1, w2, b2, w3, b3)


def _stack_critic_params(params_list):
    """Stack per-critic params into the fused-kernel layout.

    Layer-1 weights are concatenated along the output dim so the kernel can
    run one wide (D, C*H) matmul; the big matrices are stored in bf16, the
    small biases / head weights stay f32.
    """
    w1 = jnp.concatenate([p[0] for p in params_list], axis=1)            # (D, C*H)
    b1 = jnp.concatenate([p[1].reshape(1, -1) for p in params_list], 1)  # (1, C*H)
    w2 = jnp.stack([p[2] for p in params_list])                          # (C, H, H)
    b2 = jnp.stack([p[3].reshape(-1) for p in params_list])              # (C, H)
    w3 = jnp.stack([p[4].reshape(-1) for p in params_list])              # (C, H)
    b3 = jnp.stack([p[5].reshape(()) for p in params_list]).reshape(1, -1)  # (1, C)
    return (w1.astype(jnp.bfloat16), b1,
            w2.astype(jnp.bfloat16), b2,
            w3, b3)


# ---------------------------------------------------------------------------
# Critic module (Pallas mirror of trust_region_projections Critic with VFNets)
# ---------------------------------------------------------------------------
class Critic:
    def __init__(self, critic_params_list, use_target_net=True):
        self._is_vf = True
        self.num_critics = len(critic_params_list)
        # Stacked parameters (one pytree for the whole ensemble).
        self.critics = _stack_critic_params(critic_params_list)
        self.target_critics = None
        if use_target_net:
            # deepcopy-equivalent: independent copies of the (frozen) params.
            self.target_critics = jax.tree_util.tree_map(jnp.array, self.critics)

    def forward(self, x):
        return list(_ensemble_forward(x, self.critics))

    def __call__(self, x):
        return self.forward(x)

    def target(self, x):
        if self.target_critics is not None:
            return list(_ensemble_forward(x, self.target_critics))
        raise ValueError("Currently no target networks in use.")

    def update_target_net(self, polyak=1.0):
        # polyak == 1 -> completely copy weights from the source critics.
        def _polyak(s, t):
            new = polyak * s.astype(jnp.float32) + (1.0 - polyak) * t.astype(jnp.float32)
            return new.astype(s.dtype)
        self.target_critics = jax.tree_util.tree_map(
            _polyak, self.critics, self.target_critics)


# ---------------------------------------------------------------------------
# Self-test
# ---------------------------------------------------------------------------
if __name__ == "__main__":
    batch = 8
    obs_dim = 16
    hidden_dim = 32
    num_critics = 2

    key = jax.random.PRNGKey(0)
    k_x, *k_critics = jax.random.split(key, 1 + num_critics)

    x = jax.random.normal(k_x, (batch, obs_dim), jnp.float32)
    critic_params = [init_vfnet_params(k, obs_dim, hidden_dim) for k in k_critics]

    critic = Critic(critic_params, use_target_net=True)

    outs = critic(x)                                  # list of (batch, 1)
    outs = [jax.block_until_ready(o) for o in outs]

    # Shape / finiteness checks.
    assert len(outs) == num_critics
    for o in outs:
        assert o.shape == (batch, 1)
        assert bool(jnp.all(jnp.isfinite(o)))

    # Matched-precision reference (bf16 matmuls, f32 accumulation), tight tol.
    def ref_forward_bf16(xv, params):
        w1, b1, w2, b2, w3, b3 = params
        h1 = jnp.tanh(
            jnp.dot(xv.astype(jnp.bfloat16), w1.astype(jnp.bfloat16),
                    preferred_element_type=jnp.float32) + b1)
        h2 = jnp.tanh(
            jnp.dot(h1.astype(jnp.bfloat16), w2.astype(jnp.bfloat16),
                    preferred_element_type=jnp.float32) + b2)
        return h2 @ w3 + b3

    # Full-precision reference, loose tolerance (bf16 weight storage).
    def ref_forward_f32(xv, params):
        w1, b1, w2, b2, w3, b3 = params
        h1 = jnp.tanh(xv @ w1 + b1)
        h2 = jnp.tanh(h1 @ w2 + b2)
        return h2 @ w3 + b3

    for o, params in zip(outs, critic_params):
        r_bf = ref_forward_bf16(x, params)
        assert bool(jnp.allclose(o, r_bf, rtol=1e-4, atol=1e-4)), \
            "mismatch vs matched-precision reference"
        r_f32 = ref_forward_f32(x, params)
        assert bool(jnp.allclose(o, r_f32, rtol=5e-2, atol=5e-2)), \
            "mismatch vs f32 reference"

    # Target nets exist and run through the same fused kernel.
    t_outs = [jax.block_until_ready(o) for o in critic.target(x)]
    assert len(t_outs) == num_critics
    for o, r in zip(t_outs, outs):
        assert bool(jnp.allclose(o, r, rtol=1e-6, atol=1e-6))  # targets start as copies

    # Polyak update still works on the stacked params.
    critic.update_target_net(polyak=0.5)
    _ = [jax.block_until_ready(o) for o in critic.target(x)]

    # Exercise the padded / multi-tile path once (batch not multiple of the tile).
    x_big = jax.random.normal(jax.random.PRNGKey(1), (300, obs_dim), jnp.float32)
    big_outs = [jax.block_until_ready(o) for o in critic(x_big)]
    for o in big_outs:
        assert o.shape == (300, 1)
        assert bool(jnp.all(jnp.isfinite(o)))

    print("KERNEL_OK")
</pallas_src>

<mosaic_0001>
module attributes {stable_mosaic.version = 11 : i64} {
  func.func @_ensemble_kernel(%arg0: i32, %arg1: memref<8x16xf32, #tpu.memory_space<vmem>>, %arg2: memref<16x64xbf16, #tpu.memory_space<vmem>>, %arg3: memref<1x64xf32, #tpu.memory_space<vmem>>, %arg4: memref<2x32x32xbf16, #tpu.memory_space<vmem>>, %arg5: memref<2x32xf32, #tpu.memory_space<vmem>>, %arg6: memref<2x32xf32, #tpu.memory_space<vmem>>, %arg7: memref<1x2xf32, #tpu.memory_space<vmem>>, %arg8: memref<8x2xf32, #tpu.memory_space<vmem>>) attributes {dimension_semantics = [#tpu.dimension_semantics<parallel>], iteration_bounds = array<i64: 1>, scalar_prefetch = 0 : i64, scratch_operands = 0 : i64, tpu.core_type = #tpu.core_type<tc>, window_params = [{transform_indices = @transform_0, window_bounds = array<i64: 8, 16>}, {pipeline_mode = #tpu.pipeline_mode<synchronous>, transform_indices = @transform_1, window_bounds = array<i64: 16, 64>}, {pipeline_mode = #tpu.pipeline_mode<synchronous>, transform_indices = @transform_2, window_bounds = array<i64: 1, 64>}, {pipeline_mode = #tpu.pipeline_mode<synchronous>, transform_indices = @transform_3, window_bounds = array<i64: 2, 32, 32>}, {pipeline_mode = #tpu.pipeline_mode<synchronous>, transform_indices = @transform_4, window_bounds = array<i64: 2, 32>}, {pipeline_mode = #tpu.pipeline_mode<synchronous>, transform_indices = @transform_5, window_bounds = array<i64: 2, 32>}, {pipeline_mode = #tpu.pipeline_mode<synchronous>, transform_indices = @transform_6, window_bounds = array<i64: 1, 2>}, {transform_indices = @transform_7, window_bounds = array<i64: 8, 2>}]} {
    %c0 = arith.constant 0 : index
    %c0_0 = arith.constant 0 : index
    %0 = vector.load %arg1[%c0, %c0_0] : memref<8x16xf32, #tpu.memory_space<vmem>>, vector<8x16xf32>
    %1 = arith.truncf %0 : vector<8x16xf32> to vector<8x16xbf16>
    %c0_1 = arith.constant 0 : index
    %c0_2 = arith.constant 0 : index
    %2 = vector.load %arg2[%c0_1, %c0_2] : memref<16x64xbf16, #tpu.memory_space<vmem>>, vector<16x64xbf16>
    %cst = arith.constant dense<0.000000e+00> : vector<8x64xf32>
    %3 = tpu.matmul %1, %2, %cst {dimension_numbers = #tpu.dot_dimension_numbers<[1], [0], [0], [1], [0, 0, 1, 1], [], []>} : vector<8x16xbf16>, vector<16x64xbf16>, vector<8x64xf32> -> vector<8x64xf32>
    %c0_3 = arith.constant 0 : index
    %c0_4 = arith.constant 0 : index
    %4 = vector.load %arg3[%c0_3, %c0_4] : memref<1x64xf32, #tpu.memory_space<vmem>>, vector<1x64xf32>
    %5 = vector.broadcast %4 : vector<1x64xf32> to vector<8x64xf32>
    %6 = arith.addf %3, %5 : vector<8x64xf32>
    %7 = math.tanh %6 : vector<8x64xf32>
    %8 = vector.extract_strided_slice %7 {offsets = [0, 0], sizes = [8, 32], strides = [1, 1]} : vector<8x64xf32> to vector<8x32xf32>
    %9 = arith.truncf %8 : vector<8x32xf32> to vector<8x32xbf16>
    %c0_5 = arith.constant 0 : index
    %c0_6 = arith.constant 0 : index
    %c0_7 = arith.constant 0 : index
    %10 = vector.load %arg4[%c0_5, %c0_6, %c0_7] : memref<2x32x32xbf16, #tpu.memory_space<vmem>>, vector<1x32x32xbf16>
    %11 = vector.shape_cast %10 : vector<1x32x32xbf16> to vector<32x32xbf16>
    %cst_8 = arith.constant dense<0.000000e+00> : vector<8x32xf32>
    %12 = tpu.matmul %9, %11, %cst_8 {dimension_numbers = #tpu.dot_dimension_numbers<[1], [0], [0], [1], [0, 0, 1, 1], [], []>} : vector<8x32xbf16>, vector<32x32xbf16>, vector<8x32xf32> -> vector<8x32xf32>
    %c0_9 = arith.constant 0 : index
    %c0_10 = arith.constant 0 : index
    %13 = vector.load %arg5[%c0_9, %c0_10] : memref<2x32xf32, #tpu.memory_space<vmem>>, vector<1x32xf32>
    %14 = vector.broadcast %13 : vector<1x32xf32> to vector<8x32xf32>
    %15 = arith.addf %12, %14 : vector<8x32xf32>
    %16 = math.tanh %15 : vector<8x32xf32>
    %c0_11 = arith.constant 0 : index
    %c0_12 = arith.constant 0 : index
    %17 = vector.load %arg6[%c0_11, %c0_12] : memref<2x32xf32, #tpu.memory_space<vmem>>, vector<1x32xf32>
    %18 = vector.broadcast %17 : vector<1x32xf32> to vector<8x32xf32>
    %19 = arith.mulf %16, %18 : vector<8x32xf32>
    %cst_13 = arith.constant dense<0.000000e+00> : vector<8xf32>
    %20 = vector.multi_reduction <add>, %19, %cst_13 [1] : vector<8x32xf32> to vector<8xf32>
    %21 = vector.shape_cast %20 : vector<8xf32> to vector<8x1xf32>
    %22 = vector.extract_strided_slice %7 {offsets = [0, 32], sizes = [8, 32], strides = [1, 1]} : vector<8x64xf32> to vector<8x32xf32>
    %23 = arith.truncf %22 : vector<8x32xf32> to vector<8x32xbf16>
    %c1 = arith.constant 1 : index
    %c0_14 = arith.constant 0 : index
    %c0_15 = arith.constant 0 : index
    %24 = vector.load %arg4[%c1, %c0_14, %c0_15] : memref<2x32x32xbf16, #tpu.memory_space<vmem>>, vector<1x32x32xbf16>
    %25 = vector.shape_cast %24 : vector<1x32x32xbf16> to vector<32x32xbf16>
    %cst_16 = arith.constant dense<0.000000e+00> : vector<8x32xf32>
    %26 = tpu.matmul %23, %25, %cst_16 {dimension_numbers = #tpu.dot_dimension_numbers<[1], [0], [0], [1], [0, 0, 1, 1], [], []>} : vector<8x32xbf16>, vector<32x32xbf16>, vector<8x32xf32> -> vector<8x32xf32>
    %c1_17 = arith.constant 1 : index
    %c0_18 = arith.constant 0 : index
    %27 = vector.load %arg5[%c1_17, %c0_18] : memref<2x32xf32, #tpu.memory_space<vmem>>, vector<1x32xf32>
    %28 = vector.broadcast %27 : vector<1x32xf32> to vector<8x32xf32>
    %29 = arith.addf %26, %28 : vector<8x32xf32>
    %30 = math.tanh %29 : vector<8x32xf32>
    %c1_19 = arith.constant 1 : index
    %c0_20 = arith.constant 0 : index
    %31 = vector.load %arg6[%c1_19, %c0_20] : memref<2x32xf32, #tpu.memory_space<vmem>>, vector<1x32xf32>
    %32 = vector.broadcast %31 : vector<1x32xf32> to vector<8x32xf32>
    %33 = arith.mulf %30, %32 : vector<8x32xf32>
    %cst_21 = arith.constant dense<0.000000e+00> : vector<8xf32>
    %34 = vector.multi_reduction <add>, %33, %cst_21 [1] : vector<8x32xf32> to vector<8xf32>
    %35 = vector.shape_cast %34 : vector<8xf32> to vector<8x1xf32>
    %36 = tpu.concatenate %21, %35 in 1 : vector<8x1xf32>, vector<8x1xf32> -> vector<8x2xf32>
    %c0_22 = arith.constant 0 : index
    %c0_23 = arith.constant 0 : index
    %37 = vector.load %arg7[%c0_22, %c0_23] : memref<1x2xf32, #tpu.memory_space<vmem>>, vector<1x2xf32>
    %38 = vector.broadcast %37 : vector<1x2xf32> to vector<8x2xf32>
    %39 = arith.addf %36, %38 : vector<8x2xf32>
    %c0_24 = arith.constant 0 : index
    %c0_25 = arith.constant 0 : index
    %40 = vector.load %arg8[%c0_24, %c0_25] : memref<8x2xf32, #tpu.memory_space<vmem>>, vector<8x2xf32>
    tpu.vector_store %arg8[%c0_24, %c0_25], %39 {strides = array<i32>} : memref<8x2xf32, #tpu.memory_space<vmem>>, vector<8x2xf32>,
    return
  }
  func.func @transform_0(%arg0: i32) -> (i32, i32) {
    %c0_i32 = arith.constant 0 : i32
    %c0_i32_0 = arith.constant 0 : i32
    return %arg0, %c0_i32 : i32, i32
  }
  func.func @transform_1(%arg0: i32) -> (i32, i32) {
    %c0_i32 = arith.constant 0 : i32
    %c0_i32_0 = arith.constant 0 : i32
    %c0_i32_1 = arith.constant 0 : i32
    return %c0_i32, %c0_i32_0 : i32, i32
  }
  func.func @transform_2(%arg0: i32) -> (i32, i32) {
    %c0_i32 = arith.constant 0 : i32
    %c0_i32_0 = arith.constant 0 : i32
    %c0_i32_1 = arith.constant 0 : i32
    return %c0_i32, %c0_i32_0 : i32, i32
  }
  func.func @transform_3(%arg0: i32) -> (i32, i32, i32) {
    %c0_i32 = arith.constant 0 : i32
    %c0_i32_0 = arith.constant 0 : i32
    %c0_i32_1 = arith.constant 0 : i32
    %c0_i32_2 = arith.constant 0 : i32
    return %c0_i32, %c0_i32_0, %c0_i32_1 : i32, i32, i32
  }
  func.func @transform_4(%arg0: i32) -> (i32, i32) {
    %c0_i32 = arith.constant 0 : i32
    %c0_i32_0 = arith.constant 0 : i32
    %c0_i32_1 = arith.constant 0 : i32
    return %c0_i32, %c0_i32_0 : i32, i32
  }
  func.func @transform_5(%arg0: i32) -> (i32, i32) {
    %c0_i32 = arith.constant 0 : i32
    %c0_i32_0 = arith.constant 0 : i32
    %c0_i32_1 = arith.constant 0 : i32
    return %c0_i32, %c0_i32_0 : i32, i32
  }
  func.func @transform_6(%arg0: i32) -> (i32, i32) {
    %c0_i32 = arith.constant 0 : i32
    %c0_i32_0 = arith.constant 0 : i32
    %c0_i32_1 = arith.constant 0 : i32
    return %c0_i32, %c0_i32_0 : i32, i32
  }
  func.func @transform_7(%arg0: i32) -> (i32, i32) {
    %c0_i32 = arith.constant 0 : i32
    %c0_i32_0 = arith.constant 0 : i32
    return %arg0, %c0_i32 : i32, i32
  }
}

</mosaic_0001>

<llo_original>
// kernel: _ensemble_forward.1
$region0: #{_ensemble_forward.1}
  #allocation0 [shape = 'u32[]', space=smem, size = 0x4, offset = 0x4, fixed_abs, tag = 'smem constant byte address 0x4 - core index']
  #allocation1 [shape = 'u32[144,128]{1,0:T(1,128)}', space=vmem, size = 0x12000, scoped, tag = 'internal scratch']
  %s0 = inlined_call_operand.hbm [shape: f32[8,16], index: 0, kind: input, shape index: {}]
  %s1 = inlined_call_operand.hbm [shape: bf16[16,64], index: 1, kind: input, shape index: {}]
  %s2 = inlined_call_operand.vmem [shape: f32[1,64], index: 2, kind: input, shape index: {}]
  %s3 = inlined_call_operand.hbm [shape: bf16[2,32,32], index: 3, kind: input, shape index: {}]
  %s4 = inlined_call_operand.vmem [shape: f32[2,32], index: 4, kind: input, shape index: {}]
  %s5 = inlined_call_operand.vmem [shape: f32[2,32], index: 5, kind: input, shape index: {}]
  %s6 = inlined_call_operand.vmem [shape: f32[1,2], index: 6, kind: input, shape index: {}]
  %s7 = inlined_call_operand.vmem [shape: f32[8,2], index: 7, kind: output, shape index: {}]
  %s8 = sld [smem:[#allocation0]]
  $region50: #{_ensemble_forward.1} parent=0
    _
  %s10 = ssub.s32 1, %s8
  %s11 = scalar_select 0, %s10, %s8
  $region1: #{_ensemble_forward.1} parent=0
    #allocation2 [shape = 'u8[4096]{0}', space=vmem, size = 0x1000, scoped, tag = 'input window, operand 0, single buffered']
    #allocation3 [shape = 's32[1]{0}', space=sflag, size = 0x4, scoped, tag = 'scoped memory for _ensemble_forward.1']
    #allocation4 [shape = 'u8[4096]{0}', space=vmem, size = 0x1000, scoped, tag = 'input window, operand 1, single buffered']
    #allocation5 [shape = 's32[1]{0}', space=sflag, size = 0x4, scoped, tag = 'scoped memory for _ensemble_forward.1']
    #allocation6 [shape = 'u8[16384]{0}', space=vmem, size = 0x4000, scoped, tag = 'input window, operand 3, single buffered']
    %12 = vsyncpa [#allocation3], 0
    %13 = vsyncpa [#allocation5], 0
    // Predicated region
    $region2: #{_ensemble_forward.1} parent=1 // pred_check
      _
    $region3: #{_ensemble_forward.1} parent=1 // pred_check_branch
      %15 = sbr.rel (0) target = $region5
    $region4: #{_ensemble_forward.1} parent=1 // pred_region
      %s17 = ssub.s32 128, 128
      %18 = vsyncadd [#allocation3], %s17
      %s20 = sshll.u32 [#allocation2], 4
      %s21 = int_to_ptr.vmem [resolvable:$true] %s20
      %23 = dma.hbm_to_vmem [thread:$0]  %s0, 128, %s21, [#allocation3]
    $region5: #{_ensemble_forward.1} parent=1 // pred_fallthru
      _
    // Predicated region
    $region6: #{_ensemble_forward.1} parent=1 // pred_check
      _
    $region7: #{_ensemble_forward.1} parent=1 // pred_check_branch
      %25 = sbr.rel (0) target = $region9
    $region8: #{_ensemble_forward.1} parent=1 // pred_region
      %s27 = ssub.s32 128, 128
      %28 = vsyncadd [#allocation5], %s27
      %s29 = sshll.u32 [#allocation4], 4
      %s30 = int_to_ptr.vmem [resolvable:$true] %s29
      %35 = dma.hbm_to_vmem [thread:$0]  %s1, 128, %s30, [#allocation5], 64, 64, 4
    $region9: #{_ensemble_forward.1} parent=1 // pred_fallthru
      _
    // Predicated region
    $region10: #{_ensemble_forward.1} parent=1 // pred_check
      _
    $region11: #{_ensemble_forward.1} parent=1 // pred_check_branch
      %37 = sbr.rel (0) target = $region13
    $region12: #{_ensemble_forward.1} parent=1 // pred_region
      _
    $region13: #{_ensemble_forward.1} parent=1 // pred_fallthru
      _
    // Predicated region
    $region14: #{_ensemble_forward.1} parent=1 // pred_check
      _
    $region15: #{_ensemble_forward.1} parent=1 // pred_check_branch
      %39 = sbr.rel (0) target = $region17
    $region16: #{_ensemble_forward.1} parent=1 // pred_region
      %s41 = ssub.s32 512, 512
      %42 = vsyncadd [#allocation5], %s41
      %s43 = sshll.u32 [#allocation6], 4
      %s44 = int_to_ptr.vmem [resolvable:$true] %s43
      %49 = dma.hbm_to_vmem [thread:$0]  %s3, 512, %s44, [#allocation5], 64, 64, 4
    $region17: #{_ensemble_forward.1} parent=1 // pred_fallthru
      _
    // Predicated region
    $region18: #{_ensemble_forward.1} parent=1 // pred_check
      _
    $region19: #{_ensemble_forward.1} parent=1 // pred_check_branch
      %51 = sbr.rel (0) target = $region21
    $region20: #{_ensemble_forward.1} parent=1 // pred_region
      _
    $region21: #{_ensemble_forward.1} parent=1 // pred_fallthru
      _
    // Predicated region
    $region22: #{_ensemble_forward.1} parent=1 // pred_check
      _
    $region23: #{_ensemble_forward.1} parent=1 // pred_check_branch
      %53 = sbr.rel (0) target = $region25
    $region24: #{_ensemble_forward.1} parent=1 // pred_region
      _
    $region25: #{_ensemble_forward.1} parent=1 // pred_fallthru
      _
    // Predicated region
    $region26: #{_ensemble_forward.1} parent=1 // pred_check
      _
    $region27: #{_ensemble_forward.1} parent=1 // pred_check_branch
      %55 = sbr.rel (0) target = $region29
    $region28: #{_ensemble_forward.1} parent=1 // pred_region
      _
    $region29: #{_ensemble_forward.1} parent=1 // pred_fallthru
      _
    // Predicated region
    $region30: #{_ensemble_forward.1} parent=1 // pred_check
      _
    $region31: #{_ensemble_forward.1} parent=1 // pred_check_branch
      %57 = sbr.rel (0) target = $region33
    $region32: #{_ensemble_forward.1} parent=1 // pred_region
      %58 = dma.done [#allocation3], 128
    $region33: #{_ensemble_forward.1} parent=1 // pred_fallthru
      _
    // Predicated region
    $region34: #{_ensemble_forward.1} parent=1 // pred_check
      _
    $region35: #{_ensemble_forward.1} parent=1 // pred_check_branch
      %60 = sbr.rel (0) target = $region37
    $region36: #{_ensemble_forward.1} parent=1 // pred_region
      %61 = dma.done [#allocation5], 128
    $region37: #{_ensemble_forward.1} parent=1 // pred_fallthru
      _
    // Predicated region
    $region38: #{_ensemble_forward.1} parent=1 // pred_check
      _
    $region39: #{_ensemble_forward.1} parent=1 // pred_check_branch
      %63 = sbr.rel (0) target = $region41
    $region40: #{_ensemble_forward.1} parent=1 // pred_region
      %64 = dma.done [#allocation5], 512
    $region41: #{_ensemble_forward.1} parent=1 // pred_fallthru
      _
    %v66 = vld [vmem:[#allocation2] sm:$0xff]
    %v67 = vpack.c.bf16 %v66, %v66
    %v68 = vld [vmem:[#allocation4] sm:$0xf]
    %v69 = vld [vmem:[#allocation4 + $0x4] sm:$0xf]
    %v70 = vld [vmem:[%s2] sm:$0x1]
    %v72 = vlaneseq
    %v73 = vshrl.u32 %v72, 7
    %v74 = vsub.s32 0, %v73
    %v75 = vrot.slane %v70, %v74
    %v79 = vunpack.c.l.b16 %v68
    %v80 = vunpack.c.l.b16 %v69
    %v81 = vpack.c.b16 %v80, %v79
    %vm83 = vcmask 130048
    %v85 = vsel %vm83, %v67, 0
    %87 = vmatprep.subr.bf16.mxu0 0
    %88 = vmatpush1.bf16.msra.mxu0 0
    %89 = vmatprep.subr.bf16.mxu0 0
    %90 = vmatpush1.bf16.msra.mxu0 0
    %91 = vmatprep.subr.bf16.mxu0 0
    %92 = vmatpush1.bf16.msra.mxu0 0
    %93 = vmatprep.subr.bf16.mxu0 0
    %94 = vmatpush1.bf16.msra.mxu0 0
    %95 = vmatprep.subr.bf16.mxu0 0
    %96 = vmatpush1.bf16.msra.mxu0 0
    %97 = vmatprep.subr.bf16.mxu0 0
    %98 = vmatpush1.bf16.msra.mxu0 0
    %99 = vmatprep.subr.bf16.mxu0 0
    %100 = vmatpush1.bf16.msra.mxu0 0
    %101 = vmatprep.subr.bf16.mxu0 0
    %102 = vmatpush1.bf16.msra.mxu0 %v81
    %103 = vmatprep.subr.bf16.mxu0 0
    %104 = vmatpush2.bf16.msra.mxu0 0
    %105 = vmatprep.subr.bf16.mxu0 0
    %106 = vmatpush2.bf16.msra.mxu0 0
    %107 = vmatprep.subr.bf16.mxu0 0
    %108 = vmatpush2.bf16.msra.mxu0 0
    %109 = vmatprep.subr.bf16.mxu0 0
    %110 = vmatpush2.bf16.msra.mxu0 0
    %111 = vmatprep.subr.bf16.mxu0 0
    %112 = vmatpush2.bf16.msra.mxu0 0
    %113 = vmatprep.subr.bf16.mxu0 0
    %114 = vmatpush2.bf16.msra.mxu0 0
    %115 = vmatprep.subr.bf16.mxu0 0
    %116 = vmatpush2.bf16.msra.mxu0 0
    %117 = vmatprep.subr.bf16.mxu0 0
    %118 = vmatpush2.bf16.msra.mxu0 0
    %119 = vmatprep.mubr.bf16.mxu0 0
    %120 = vmatmul.mubr.bf16.gmra.mxu0 %v85
    %v121 = vpop.f32.mrf.mxu0
    %v122 = vadd.f32 %v75, %v121
    %v123 = vpop.f32.mrf.mxu0
    %v124 = vpop.f32.mrf.mxu0
    %v125 = vpop.f32.mrf.mxu0
    %126 = vdwg.mxu0
    %v127 = vtanh.pop %v122
    %v128 = vpack.c.bf16 %v127, %v127
    %v129 = vld [vmem:[#allocation6] sm:$0xf]
    %v130 = vld [vmem:[#allocation6 + $0x4] sm:$0xf]
    %v131 = vld [vmem:[#allocation6 + $0x8] sm:$0xf]
    %v132 = vld [vmem:[#allocation6 + $0xc] sm:$0xf]
    %v133 = vld [vmem:[%s4] sm:$0x1]
    %v134 = vlaneseq
    %v135 = vshrl.u32 %v134, 7
    %v136 = vsub.s32 0, %v135
    %v137 = vrot.slane %v133, %v136
    %v142 = vunpack.c.l.b16 %v129
    %v143 = vunpack.c.l.b16 %v130
    %v144 = vunpack.c.l.b16 %v131
    %v145 = vunpack.c.l.b16 %v132
    %v146 = vpack.c.b16 %v143, %v142
    %v147 = vpack.c.b16 %v145, %v144
    %vm150 = vcmask 261120
    %v152 = vsel %vm150, %v128, 0
    %154 = vmatprep.subr.bf16.mxu0 0
    %155 = vmatpush1.bf16.msra.mxu0 0
    %156 = vmatprep.subr.bf16.mxu0 0
    %157 = vmatpush1.bf16.msra.mxu0 0
    %158 = vmatprep.subr.bf16.mxu0 0
    %159 = vmatpush1.bf16.msra.mxu0 0
    %160 = vmatprep.subr.bf16.mxu0 0
    %161 = vmatpush1.bf16.msra.mxu0 0
    %162 = vmatprep.subr.bf16.mxu0 0
    %163 = vmatpush1.bf16.msra.mxu0 0
    %164 = vmatprep.subr.bf16.mxu0 0
    %165 = vmatpush1.bf16.msra.mxu0 0
    %166 = vmatprep.subr.bf16.mxu0 0
    %167 = vmatpush1.bf16.msra.mxu0 %v147
    %168 = vmatprep.subr.bf16.mxu0 0
    %169 = vmatpush1.bf16.msra.mxu0 %v146
    %170 = vmatprep.subr.bf16.mxu0 0
    %171 = vmatpush2.bf16.msra.mxu0 0
    %172 = vmatprep.subr.bf16.mxu0 0
    %173 = vmatpush2.bf16.msra.mxu0 0
    %174 = vmatprep.subr.bf16.mxu0 0
    %175 = vmatpush2.bf16.msra.mxu0 0
    %176 = vmatprep.subr.bf16.mxu0 0
    %177 = vmatpush2.bf16.msra.mxu0 0
    %178 = vmatprep.subr.bf16.mxu0 0
    %179 = vmatpush2.bf16.msra.mxu0 0
    %180 = vmatprep.subr.bf16.mxu0 0
    %181 = vmatpush2.bf16.msra.mxu0 0
    %182 = vmatprep.subr.bf16.mxu0 0
    %183 = vmatpush2.bf16.msra.mxu0 0
    %184 = vmatprep.subr.bf16.mxu0 0
    %185 = vmatpush2.bf16.msra.mxu0 0
    %186 = vmatprep.mubr.bf16.mxu0 0
    %187 = vmatmul.mubr.bf16.gmra.mxu0 %v152
    %v188 = vpop.f32.mrf.mxu0
    %v189 = vadd.f32 %v137, %v188
    %v190 = vpop.f32.mrf.mxu0
    %v191 = vpop.f32.mrf.mxu0
    %v192 = vpop.f32.mrf.mxu0
    %193 = vdwg.mxu0
    %v194 = vtanh.pop %v189
    %v195 = vld [vmem:[%s5] sm:$0x1]
    %v196 = vlaneseq
    %v197 = vshrl.u32 %v196, 7
    %v198 = vsub.s32 0, %v197
    %v199 = vrot.slane %v195, %v198
    %v200 = vmul.f32 %v194, %v199
    %v201 = vsel %vm150, %v200, 0.0
    %202 = vadd.xlane.f32.xlu0 %v201
    %v203 = vpop.xlane.xlu0 %202
    %s204 = scalar_lea.vmem [#allocation6], 16
    %v205 = vld [vmem:[%s204] sm:$0xf]
    %v206 = vld [vmem:[%s204 + $0x4] sm:$0xf]
    %v207 = vld [vmem:[%s204 + $0x8] sm:$0xf]
    %v208 = vld [vmem:[%s204 + $0xc] sm:$0xf]
    %v209 = vld [vmem:[%s4 + $0x1] sm:$0x1]
    %v210 = vlaneseq
    %v211 = vshrl.u32 %v210, 7
    %v212 = vsub.s32 0, %v211
    %v213 = vrot.slane %v209, %v212
    %215 = vrot.lane.b32.xlu0 %v128, 96
    %v216 = vpop.permute.xlu0 %215
    %v221 = vunpack.c.l.b16 %v205
    %v222 = vunpack.c.l.b16 %v206
    %v223 = vunpack.c.l.b16 %v207
    %v224 = vunpack.c.l.b16 %v208
    %v225 = vpack.c.b16 %v222, %v221
    %v226 = vpack.c.b16 %v224, %v223
    %v230 = vsel %vm150, %v216, 0
    %232 = vmatprep.subr.bf16.mxu0 0
    %233 = vmatpush1.bf16.msra.mxu0 0
    %234 = vmatprep.subr.bf16.mxu0 0
    %235 = vmatpush1.bf16.msra.mxu0 0
    %236 = vmatprep.subr.bf16.mxu0 0
    %237 = vmatpush1.bf16.msra.mxu0 0
    %238 = vmatprep.subr.bf16.mxu0 0
    %239 = vmatpush1.bf16.msra.mxu0 0
    %240 = vmatprep.subr.bf16.mxu0 0
    %241 = vmatpush1.bf16.msra.mxu0 0
    %242 = vmatprep.subr.bf16.mxu0 0
    %243 = vmatpush1.bf16.msra.mxu0 0
    %244 = vmatprep.subr.bf16.mxu0 0
    %245 = vmatpush1.bf16.msra.mxu0 %v226
    %246 = vmatprep.subr.bf16.mxu0 0
    %247 = vmatpush1.bf16.msra.mxu0 %v225
    %248 = vmatprep.subr.bf16.mxu0 0
    %249 = vmatpush2.bf16.msra.mxu0 0
    %250 = vmatprep.subr.bf16.mxu0 0
    %251 = vmatpush2.bf16.msra.mxu0 0
    %252 = vmatprep.subr.bf16.mxu0 0
    %253 = vmatpush2.bf16.msra.mxu0 0
    %254 = vmatprep.subr.bf16.mxu0 0
    %255 = vmatpush2.bf16.msra.mxu0 0
    %256 = vmatprep.subr.bf16.mxu0 0
    %257 = vmatpush2.bf16.msra.mxu0 0
    %258 = vmatprep.subr.bf16.mxu0 0
    %259 = vmatpush2.bf16.msra.mxu0 0
    %260 = vmatprep.subr.bf16.mxu0 0
    %261 = vmatpush2.bf16.msra.mxu0 0
    %262 = vmatprep.subr.bf16.mxu0 0
    %263 = vmatpush2.bf16.msra.mxu0 0
    %264 = vmatprep.mubr.bf16.mxu0 0
    %265 = vmatmul.mubr.bf16.gmra.mxu0 %v230
    %v266 = vpop.f32.mrf.mxu0
    %v267 = vadd.f32 %v213, %v266
    %v268 = vpop.f32.mrf.mxu0
    %v269 = vpop.f32.mrf.mxu0
    %v270 = vpop.f32.mrf.mxu0
    %271 = vdwg.mxu0
    %v272 = vtanh.pop %v267
    %v273 = vld [vmem:[%s5 + $0x1] sm:$0x1]
    %v274 = vlaneseq
    %v275 = vshrl.u32 %v274, 7
    %v276 = vsub.s32 0, %v275
    %v277 = vrot.slane %v273, %v276
    %v278 = vmul.f32 %v272, %v277
    %v279 = vsel %vm150, %v278, 0.0
    %280 = vadd.xlane.f32.xlu0 %v279
    %v281 = vpop.xlane.xlu0 %280
    %vm282 = vcmask 7168
    %v283 = vsel %vm282, %v203, %v281
    %v284 = vld [vmem:[%s6] sm:$0x1]
    %v286 = vlaneseq
    %v287 = vshrl.u32 %v286, 7
    %v288 = vsub.s32 0, %v287
    %v289 = vrot.slane %v284, %v288
    %v291 = vadd.f32 %v283, %v289
    %vm292 = vcmask 15360
    %293 = vst.msk [vmem:[%s7] sm:$0xff] %vm292, %v291
    // Predicated region
    $region42: #{_ensemble_forward.1} parent=1 // pred_check
      _
    $region43: #{_ensemble_forward.1} parent=1 // pred_check_branch
      %295 = sbr.rel (0) target = $region45
    $region44: #{_ensemble_forward.1} parent=1 // pred_region
      _
    $region45: #{_ensemble_forward.1} parent=1 // pred_fallthru
      _
    // Predicated region
    $region46: #{_ensemble_forward.1} parent=1 // pred_check
      _
    $region47: #{_ensemble_forward.1} parent=1 // pred_check_branch
      %297 = sbr.rel (0) target = $region49
    $region48: #{_ensemble_forward.1} parent=1 // pred_region
      _
    $region49: #{_ensemble_forward.1} parent=1 // pred_fallthru
      _
    %298 = vsyncpa [#allocation3], 1
    %299 = vsyncpa [#allocation5], 1

</llo_original>
